<compile_context>
chip_gen: v6e
topology: v6e:2x2x1
jax: 0.10.0
libtpu: 0.0.40
codegen_flags: <defaults>
</compile_context>

<pallas_src>
import math

import jax
import jax.numpy as jnp
from jax.experimental import pallas as pl
from jax.experimental.pallas import tpu as pltpu


def _round_up(a: int, b: int) -> int:
    return ((a + b - 1) // b) * b


_GELU_C = math.sqrt(2.0 / math.pi)


def _linear_gelu_kernel(x_ref, w_ref, b_ref, o_ref, acc_ref):
    """Grid step (i, j, k): acc[i,j] += x[i,k] @ w[k,j]; bias + GELU at last k."""
    k = pl.program_id(2)

    @pl.when(k == 0)
    def _init():
        acc_ref[...] = jnp.zeros_like(acc_ref)

    # Operands already arrive in the compute dtype (bf16 on the fast path) and
    # the weight tile is already [K, N], so this is a plain MXU matmul with an
    # f32 accumulator -- no in-kernel casts, no trans-B transpose.
    acc_ref[...] += jnp.dot(x_ref[...], w_ref[...],
                            preferred_element_type=jnp.float32)

    @pl.when(k == pl.num_programs(2) - 1)
    def _finalize():
        acc = acc_ref[...] + b_ref[...]          # bias kept in f32
        # GELU approximate='tanh' in f32 (tanh -> EUP slot; the few VPU muls
        # per element are filler under the MXU-bound matmul).
        y = 0.5 * acc * (1.0 + jnp.tanh(_GELU_C * (acc + 0.044715 * (acc * acc * acc))))
        o_ref[...] = y.astype(o_ref.dtype)


class LinearGELU:
    """Pallas-TPU equivalent of PyTorch `LinearGELU` (nn.Linear + tanh GELU).

    Weight layout / dtype / padding work is done once at construction; each
    call only reshapes (+ optionally casts) the activations and launches one
    pallas_call.

    Note: with the default compute_dtype (bf16 for f32 params) MXU operands are
    bf16 with f32 accumulation, so results differ from a true f32 PyTorch
    Linear at the ~1e-2 relative level.  Pass compute_dtype=jnp.float32 for
    bit-closer (but slower) matmuls.
    """

    def __init__(self, weight, bias, *, compute_dtype=None,
                 tile_m=512, tile_n=512, tile_k=1024):
        dim_out, dim_in = weight.shape
        self.dim_in, self.dim_out = dim_in, dim_out

        if compute_dtype is None:
            compute_dtype = (jnp.bfloat16 if weight.dtype == jnp.float32
                             else weight.dtype)
        self.compute_dtype = jnp.dtype(compute_dtype)

        # ---- tile selection (vreg / MXU aligned) --------------------------
        # rows: multiple of 16 (sublane-safe for both f32 and bf16 packing)
        self.tm_max = max(16, _round_up(tile_m, 16))
        # cols: multiple of 128 -> lane-dense (unmasked) output stores
        self.tn = min(_round_up(tile_n, 128), _round_up(dim_out, 128))
        self.n_pad = _round_up(dim_out, self.tn)
        # reduction: big K chunks; never collapse to 128 for awkward K
        tk_cap = max(256, tile_k - tile_k % 128)
        if dim_in <= tile_k:
            tk, k_pad = dim_in, dim_in                       # single full-K step
        else:
            tk = next((c for c in range(tk_cap, 255, -128) if dim_in % c == 0), 0)
            if tk:                                           # clean divisor, no pad
                k_pad = dim_in
            else:                                            # minimal zero-pad of K
                k_pad = _round_up(dim_in, 128)
                tk = next((c for c in range(tk_cap, 127, -128) if k_pad % c == 0), 128)
        self.tk, self.k_pad = tk, k_pad

        # ---- one-time static parameter prep (pad + transpose + cast) ------
        w = weight
        if (self.n_pad, self.k_pad) != (dim_out, dim_in):
            w = jnp.pad(w, ((0, self.n_pad - dim_out), (0, self.k_pad - dim_in)))
        # [dim_out, dim_in] -> [K_pad, N_pad]; done once, never per call.
        self.w_kn = jnp.asarray(w.T, dtype=self.compute_dtype)
        b2d = bias.astype(jnp.float32).reshape(1, dim_out)
        if self.n_pad != dim_out:
            b2d = jnp.pad(b2d, ((0, 0), (0, self.n_pad - dim_out)))
        self.b2d = b2d

    def __call__(self, x):
        if x.shape[-1] != self.dim_in:
            raise ValueError(f"expected last dim {self.dim_in}, got {x.shape[-1]}")
        lead_shape = x.shape[:-1]
        out_dtype = x.dtype

        x2d = x.reshape(-1, self.dim_in)
        if x2d.dtype != self.compute_dtype:
            # one fused cast in HBM -> halves per-tile DMA, removes in-kernel casts
            x2d = x2d.astype(self.compute_dtype)
        if self.k_pad != self.dim_in:
            # rare path (awkward K): zero-pad K, numerically a no-op for the matmul
            x2d = jnp.pad(x2d, ((0, 0), (0, self.k_pad - self.dim_in)))
        M = x2d.shape[0]

        # Ragged M is handled by Pallas edge masking (no per-call jnp.pad of x):
        # garbage rows of a partial tile only produce output rows >= M, which
        # the masked store discards.
        tm = min(self.tm_max, _round_up(M, 16))
        tn, n_pad, tk, k_pad = self.tn, self.n_pad, self.tk, self.k_pad
        grid_m = pl.cdiv(M, tm)
        grid_n = n_pad // tn
        # v7x megacore: guarantee >=2 parallel tiles when the problem allows it.
        if grid_m * grid_n == 1:
            if n_pad >= 256:
                tn = n_pad // 2 if (n_pad // 2) % 128 == 0 else 128
                grid_n = n_pad // tn
            elif M >= 32:
                tm = _round_up((M + 1) // 2, 16)
                grid_m = pl.cdiv(M, tm)
        grid_k = k_pad // tk
        grid = (grid_m, grid_n, grid_k)

        c_item = self.compute_dtype.itemsize
        cost = pl.CostEstimate(
            flops=int(2 * M * k_pad * n_pad),
            transcendentals=int(M * n_pad),
            bytes_accessed=int(grid_n * M * k_pad * c_item         # x re-reads
                               + grid_m * k_pad * n_pad * c_item   # w re-reads
                               + n_pad * 4                         # bias
                               + M * n_pad * jnp.dtype(out_dtype).itemsize),
        )

        out = pl.pallas_call(
            _linear_gelu_kernel,
            out_shape=jax.ShapeDtypeStruct((M, n_pad), out_dtype),
            grid_spec=pltpu.PrefetchScalarGridSpec(
                num_scalar_prefetch=0,
                grid=grid,
                in_specs=[
                    pl.BlockSpec((tm, tk), lambda i, j, k: (i, k)),   # x tiles
                    pl.BlockSpec((tk, tn), lambda i, j, k: (k, j)),   # weight [K, N]
                    pl.BlockSpec((1, tn), lambda i, j, k: (0, j)),    # bias
                ],
                out_specs=pl.BlockSpec((tm, tn), lambda i, j, k: (i, j)),
                scratch_shapes=[pltpu.VMEM((tm, tn), jnp.float32)],
            ),
            compiler_params=pltpu.CompilerParams(
                dimension_semantics=("parallel", "parallel", "arbitrary")),
            cost_estimate=cost,
        )(x2d, self.w_kn, self.b2d)

        if n_pad != self.dim_out:
            out = out[:, :self.dim_out]
        return out.reshape(*lead_shape, self.dim_out)


def init_linear_params(key, dim_in, dim_out, dtype=jnp.float32):
    # Mirror PyTorch nn.Linear default init: U(-1/sqrt(dim_in), 1/sqrt(dim_in))
    kw, kb = jax.random.split(key)
    bound = 1.0 / math.sqrt(dim_in)
    weight = jax.random.uniform(kw, (dim_out, dim_in), dtype, -bound, bound)
    bias = jax.random.uniform(kb, (dim_out,), dtype, -bound, bound)
    return weight, bias


def _ref_linear_gelu(x, weight, bias):
    h = x @ weight.T + bias
    return 0.5 * h * (1.0 + jnp.tanh(_GELU_C * (h + 0.044715 * h ** 3)))


if __name__ == "__main__":
    key = jax.random.PRNGKey(0)
    k_x, k_p, k_x2, k_p2 = jax.random.split(key, 4)

    # --- small shape matching the module spec ------------------------------
    batch, seq, dim_in, dim_out = 2, 8, 32, 64
    x = jax.random.normal(k_x, (batch, seq, dim_in), dtype=jnp.float32)
    weight, bias = init_linear_params(k_p, dim_in, dim_out)
    ref = _ref_linear_gelu(x, weight, bias)

    # exact f32 compute path
    mod_f32 = LinearGELU(weight, bias, compute_dtype=jnp.float32)
    out = jax.block_until_ready(mod_f32(x))
    assert out.shape == (batch, seq, dim_out)
    assert jnp.allclose(out, ref, atol=1e-5, rtol=1e-5)

    # default fast path: bf16 MXU operands, f32 accumulation + epilogue
    mod_bf16 = LinearGELU(weight, bias)
    out_bf16 = jax.block_until_ready(mod_bf16(x))
    assert out_bf16.shape == (batch, seq, dim_out)
    assert jnp.allclose(out_bf16, ref, atol=5e-2, rtol=5e-2)

    # --- larger shape: ragged M edge, multi-tile M, multi-step K ------------
    M2, din2, dout2 = 600, 2048, 384
    x2 = jax.random.normal(k_x2, (M2, din2), dtype=jnp.float32)
    w2, b2 = init_linear_params(k_p2, din2, dout2)
    mod2 = LinearGELU(w2, b2)          # bf16 compute, tiles 512x384x1024
    out2 = jax.block_until_ready(mod2(x2))
    ref2 = _ref_linear_gelu(x2, w2, b2)
    assert out2.shape == (M2, dout2)
    assert jnp.allclose(out2, ref2, atol=5e-2, rtol=5e-2)

    print("KERNEL_OK")
</pallas_src>

<mosaic_0001>
module attributes {stable_mosaic.version = 11 : i64} {
  func.func @_linear_gelu_kernel(%arg0: i32, %arg1: i32, %arg2: i32, %arg3: memref<16x32xf32, #tpu.memory_space<vmem>>, %arg4: memref<32x128xf32, #tpu.memory_space<vmem>>, %arg5: memref<1x128xf32, #tpu.memory_space<vmem>>, %arg6: memref<16x128xf32, #tpu.memory_space<vmem>>, %arg7: memref<16x128xf32, #tpu.memory_space<vmem>>) attributes {dimension_semantics = [#tpu.dimension_semantics<parallel>, #tpu.dimension_semantics<parallel>, #tpu.dimension_semantics<arbitrary>], iteration_bounds = array<i64: 1, 1, 1>, scalar_prefetch = 0 : i64, scratch_operands = 1 : i64, tpu.core_type = #tpu.core_type<tc>, window_params = [{transform_indices = @transform_0, window_bounds = array<i64: 16, 32>}, {transform_indices = @transform_1, window_bounds = array<i64: 32, 128>}, {transform_indices = @transform_2, window_bounds = array<i64: 1, 128>}, {transform_indices = @transform_3, window_bounds = array<i64: 16, 128>}]} {
    %c0_i32 = arith.constant 0 : i32
    %0 = arith.cmpi eq, %arg2, %c0_i32 : i32
    %1 = arith.extui %0 : i1 to i32
    %c0_i32_0 = arith.constant 0 : i32
    %2 = arith.cmpi ne, %1, %c0_i32_0 : i32
    scf.if %2 {
      %cst_10 = arith.constant 0.000000e+00 : f32
      %12 = vector.broadcast %cst_10 : f32 to vector<16x128xf32>
      %c0_11 = arith.constant 0 : index
      %c0_12 = arith.constant 0 : index
      %13 = vector.load %arg7[%c0_11, %c0_12] : memref<16x128xf32, #tpu.memory_space<vmem>>, vector<16x128xf32>
      tpu.vector_store %arg7[%c0_11, %c0_12], %12 {strides = array<i32>} : memref<16x128xf32, #tpu.memory_space<vmem>>, vector<16x128xf32>,
    } else {
    }
    %c0 = arith.constant 0 : index
    %c0_1 = arith.constant 0 : index
    %3 = vector.load %arg7[%c0, %c0_1] : memref<16x128xf32, #tpu.memory_space<vmem>>, vector<16x128xf32>
    %c0_2 = arith.constant 0 : index
    %c0_3 = arith.constant 0 : index
    %4 = vector.load %arg3[%c0_2, %c0_3] : memref<16x32xf32, #tpu.memory_space<vmem>>, vector<16x32xf32>
    %c0_4 = arith.constant 0 : index
    %c0_5 = arith.constant 0 : index
    %5 = vector.load %arg4[%c0_4, %c0_5] : memref<32x128xf32, #tpu.memory_space<vmem>>, vector<32x128xf32>
    %cst = arith.constant dense<0.000000e+00> : vector<16x128xf32>
    %6 = tpu.matmul %4, %5, %cst {dimension_numbers = #tpu.dot_dimension_numbers<[1], [0], [0], [1], [0, 0, 1, 1], [], []>} : vector<16x32xf32>, vector<32x128xf32>, vector<16x128xf32> -> vector<16x128xf32>
    %7 = arith.addf %3, %6 : vector<16x128xf32>
    %c0_6 = arith.constant 0 : index
    %c0_7 = arith.constant 0 : index
    %8 = vector.load %arg7[%c0_6, %c0_7] : memref<16x128xf32, #tpu.memory_space<vmem>>, vector<16x128xf32>
    tpu.vector_store %arg7[%c0_6, %c0_7], %7 {strides = array<i32>} : memref<16x128xf32, #tpu.memory_space<vmem>>, vector<16x128xf32>,
    %c0_i32_8 = arith.constant 0 : i32
    %9 = arith.cmpi eq, %arg2, %c0_i32_8 : i32
    %10 = arith.extui %9 : i1 to i32
    %c0_i32_9 = arith.constant 0 : i32
    %11 = arith.cmpi ne, %10, %c0_i32_9 : i32
    scf.if %11 {
      %c0_10 = arith.constant 0 : index
      %c0_11 = arith.constant 0 : index
      %12 = vector.load %arg7[%c0_10, %c0_11] : memref<16x128xf32, #tpu.memory_space<vmem>>, vector<16x128xf32>
      %c0_12 = arith.constant 0 : index
      %c0_13 = arith.constant 0 : index
      %13 = vector.load %arg5[%c0_12, %c0_13] : memref<1x128xf32, #tpu.memory_space<vmem>>, vector<1x128xf32>
      %14 = vector.broadcast %13 : vector<1x128xf32> to vector<16x128xf32>
      %15 = arith.addf %12, %14 : vector<16x128xf32>
      %cst_14 = arith.constant 5.000000e-01 : f32
      %16 = vector.broadcast %cst_14 : f32 to vector<16x128xf32>
      %17 = arith.mulf %16, %15 : vector<16x128xf32>
      %18 = arith.mulf %15, %15 : vector<16x128xf32>
      %19 = arith.mulf %18, %15 : vector<16x128xf32>
      %cst_15 = arith.constant 4.471500e-02 : f32
      %20 = vector.broadcast %cst_15 : f32 to vector<16x128xf32>
      %21 = arith.mulf %20, %19 : vector<16x128xf32>
      %22 = arith.addf %15, %21 : vector<16x128xf32>
      %cst_16 = arith.constant 0.797884583 : f32
      %23 = vector.broadcast %cst_16 : f32 to vector<16x128xf32>
      %24 = arith.mulf %23, %22 : vector<16x128xf32>
      %25 = math.tanh %24 : vector<16x128xf32>
      %cst_17 = arith.constant 1.000000e+00 : f32
      %26 = vector.broadcast %cst_17 : f32 to vector<16x128xf32>
      %27 = arith.addf %26, %25 : vector<16x128xf32>
      %28 = arith.mulf %17, %27 : vector<16x128xf32>
      %c0_18 = arith.constant 0 : index
      %c0_19 = arith.constant 0 : index
      %29 = vector.load %arg6[%c0_18, %c0_19] : memref<16x128xf32, #tpu.memory_space<vmem>>, vector<16x128xf32>
      tpu.vector_store %arg6[%c0_18, %c0_19], %28 {strides = array<i32>} : memref<16x128xf32, #tpu.memory_space<vmem>>, vector<16x128xf32>,
    } else {
    }
    return
  }
  func.func @transform_0(%arg0: i32, %arg1: i32, %arg2: i32) -> (i32, i32) {
    %c0_i32 = arith.constant 0 : i32
    return %arg0, %arg2 : i32, i32
  }
  func.func @transform_1(%arg0: i32, %arg1: i32, %arg2: i32) -> (i32, i32) {
    %c0_i32 = arith.constant 0 : i32
    return %arg2, %arg1 : i32, i32
  }
  func.func @transform_2(%arg0: i32, %arg1: i32, %arg2: i32) -> (i32, i32) {
    %c0_i32 = arith.constant 0 : i32
    %c0_i32_0 = arith.constant 0 : i32
    return %c0_i32, %arg1 : i32, i32
  }
  func.func @transform_3(%arg0: i32, %arg1: i32, %arg2: i32) -> (i32, i32) {
    %c0_i32 = arith.constant 0 : i32
    return %arg0, %arg1 : i32, i32
  }
}

</mosaic_0001>

<llo_original>
// kernel: tpu_custom_call.1
$region0: #{tpu_custom_call.1}
  #allocation0 [shape = 'u32[]', space=smem, size = 0x4, offset = 0x4, fixed_abs, tag = 'smem constant byte address 0x4 - core index']
  #allocation1 [shape = 'u32[144,128]{1,0:T(1,128)}', space=vmem, size = 0x12000, scoped, tag = 'internal scratch']
  #allocation2 [shape = 'f32[16,128]{1,0:T(8,128)}', space=vmem, size = 0x2000, scoped, tag = 'scratch operand']
  %s0 = inlined_call_operand.hbm [shape: f32[16,32], index: 0, kind: input, shape index: {}]
  %s1 = inlined_call_operand.hbm [shape: f32[32,128], index: 1, kind: input, shape index: {}]
  %s2 = inlined_call_operand.vmem [shape: f32[1,128], index: 2, kind: input, shape index: {}]
  %s3 = inlined_call_operand.hbm [shape: f32[16,128], index: 3, kind: output, shape index: {}]
  %s4 = sld [smem:[#allocation0]]
  $region38: #{tpu_custom_call.1} parent=0
    _
  %s6 = ssub.s32 1, %s4
  %s7 = scalar_select 0, %s6, %s4
  $region1: #{tpu_custom_call.1} parent=0
    #allocation3 [shape = 'u8[8192]{0}', space=vmem, size = 0x2000, scoped, tag = 'input window, operand 0, single buffered']
    #allocation4 [shape = 's32[1]{0}', space=sflag, size = 0x4, scoped, tag = 'scoped memory for tpu_custom_call.1']
    #allocation5 [shape = 's32[1]{0}', space=sflag, size = 0x4, scoped, tag = 'scoped memory for tpu_custom_call.1']
    #allocation6 [shape = 'u8[16384]{0}', space=vmem, size = 0x4000, scoped, tag = 'input window, operand 1, single buffered']
    #allocation7 [shape = 's32[1]{0}', space=sflag, size = 0x4, scoped, tag = 'scoped memory for tpu_custom_call.1']
    #allocation8 [shape = 'u8[8192]{0}', space=vmem, size = 0x2000, scoped, tag = 'output window, operand 0, single buffered']
    %8 = vsyncpa [#allocation4], 0
    %9 = vsyncpa [#allocation7], 0
    %10 = vsyncpa [#allocation5], 0
    // Predicated region
    $region2: #{tpu_custom_call.1} parent=1 // pred_check
      _
    $region3: #{tpu_custom_call.1} parent=1 // pred_check_branch
      %12 = sbr.rel (0) target = $region5
    $region4: #{tpu_custom_call.1} parent=1 // pred_region
      %s14 = ssub.s32 256, 256
      %15 = vsyncadd [#allocation4], %s14
      %s16 = sshll.u32 [#allocation3], 4
      %s17 = int_to_ptr.vmem [resolvable:$true] %s16
      %22 = dma.hbm_to_vmem [thread:$0]  %s0, 256, %s17, [#allocation4], 128, 128, 8
    $region5: #{tpu_custom_call.1} parent=1 // pred_fallthru
      _
    // Predicated region
    $region6: #{tpu_custom_call.1} parent=1 // pred_check
      _
    $region7: #{tpu_custom_call.1} parent=1 // pred_check_branch
      %24 = sbr.rel (0) target = $region9
    $region8: #{tpu_custom_call.1} parent=1 // pred_region
      %s26 = ssub.s32 512, 512
      %27 = vsyncadd [#allocation7], %s26
      %s28 = sshll.u32 [#allocation6], 4
      %s29 = int_to_ptr.vmem [resolvable:$true] %s28
      %34 = dma.hbm_to_vmem [thread:$0]  %s1, 512, %s29, [#allocation7], 128, 128, 8
    $region9: #{tpu_custom_call.1} parent=1 // pred_fallthru
      _
    // Predicated region
    $region10: #{tpu_custom_call.1} parent=1 // pred_check
      _
    $region11: #{tpu_custom_call.1} parent=1 // pred_check_branch
      %36 = sbr.rel (0) target = $region13
    $region12: #{tpu_custom_call.1} parent=1 // pred_region
      _
    $region13: #{tpu_custom_call.1} parent=1 // pred_fallthru
      _
    // Predicated region
    $region14: #{tpu_custom_call.1} parent=1 // pred_check
      _
    $region15: #{tpu_custom_call.1} parent=1 // pred_check_branch
      %38 = sbr.rel (0) target = $region17
    $region16: #{tpu_custom_call.1} parent=1 // pred_region
      %39 = dma.done [#allocation4], 256
    $region17: #{tpu_custom_call.1} parent=1 // pred_fallthru
      _
    // Predicated region
    $region18: #{tpu_custom_call.1} parent=1 // pred_check
      _
    $region19: #{tpu_custom_call.1} parent=1 // pred_check_branch
      %41 = sbr.rel (0) target = $region21
    $region20: #{tpu_custom_call.1} parent=1 // pred_region
      %42 = dma.done [#allocation7], 512
    $region21: #{tpu_custom_call.1} parent=1 // pred_fallthru
      _
    %p43 = scmp.eq.s32.totalorder 0, 0
    // Predicated region
    $region22: #{tpu_custom_call.1} parent=1 // pred_check
      %p44 = pneg %p43
    $region23: #{tpu_custom_call.1} parent=1 // pred_check_branch
      %46 = sbr.rel (%p44) target = $region25
    $region24: #{tpu_custom_call.1} parent=1 // pred_region
      %47 = vst [vmem:[#allocation2] sm:$0xff] 0.0
      %48 = vst [vmem:[#allocation2 + $0x8] sm:$0xff] 0.0
    $region25: #{tpu_custom_call.1} parent=1 // pred_fallthru
      _
    %v49 = vld [vmem:[#allocation2] sm:$0xff]
    %v50 = vld [vmem:[#allocation2 + $0x8] sm:$0xff]
    %v51 = vld [vmem:[#allocation3] sm:$0xff]
    %v52 = vld [vmem:[#allocation3 + $0x8] sm:$0xff]
    %v53 = vld [vmem:[#allocation6] sm:$0xff]
    %v54 = vld [vmem:[#allocation6 + $0x8] sm:$0xff]
    %v55 = vld [vmem:[#allocation6 + $0x10] sm:$0xff]
    %v56 = vld [vmem:[#allocation6 + $0x18] sm:$0xff]
    %vm57 = vcmask 261120
    %v59 = vsel %vm57, %v51, 0
    %v62 = vsel %vm57, %v52, 0
    %64 = vmatprep.subr.mxu0 0.0
    %65 = vmatpush1.msra.mxu0 0.0
    %66 = vmatprep.subr.mxu0 0.0
    %67 = vmatpush1.msra.mxu0 0.0
    %68 = vmatprep.subr.mxu0 0.0
    %69 = vmatpush1.msra.mxu0 0.0
    %70 = vmatprep.subr.mxu0 0.0
    %71 = vmatpush1.msra.mxu0 0.0
    %72 = vmatprep.subr.mxu0 0.0
    %73 = vmatpush1.msra.mxu0 0.0
    %74 = vmatprep.subr.mxu0 0.0
    %75 = vmatpush1.msra.mxu0 0.0
    %76 = vmatprep.subr.mxu0 0.0
    %77 = vmatpush1.msra.mxu0 0.0
    %78 = vmatprep.subr.mxu0 0.0
    %79 = vmatpush1.msra.mxu0 0.0
    %80 = vmatprep.subr.mxu0 0.0
    %81 = vmatpush1.msra.mxu0 0.0
    %82 = vmatprep.subr.mxu0 0.0
    %83 = vmatpush1.msra.mxu0 0.0
    %84 = vmatprep.subr.mxu0 0.0
    %85 = vmatpush1.msra.mxu0 0.0
    %86 = vmatprep.subr.mxu0 0.0
    %87 = vmatpush1.msra.mxu0 0.0
    %88 = vmatprep.subr.mxu0 0.0
    %89 = vmatpush1.msra.mxu0 %v56
    %90 = vmatprep.subr.mxu0 0.0
    %91 = vmatpush1.msra.mxu0 %v55
    %92 = vmatprep.subr.mxu0 0.0
    %93 = vmatpush1.msra.mxu0 %v54
    %94 = vmatprep.subr.mxu0 0.0
    %95 = vmatpush1.msra.mxu0 %v53
    %96 = vmatprep.subr.mxu0 0.0
    %97 = vmatpush2.msra.mxu0 0.0
    %98 = vmatprep.subr.mxu0 0.0
    %99 = vmatpush2.msra.mxu0 0.0
    %100 = vmatprep.subr.mxu0 0.0
    %101 = vmatpush2.msra.mxu0 0.0
    %102 = vmatprep.subr.mxu0 0.0
    %103 = vmatpush2.msra.mxu0 0.0
    %104 = vmatprep.subr.mxu0 0.0
    %105 = vmatpush2.msra.mxu0 0.0
    %106 = vmatprep.subr.mxu0 0.0
    %107 = vmatpush2.msra.mxu0 0.0
    %108 = vmatprep.subr.mxu0 0.0
    %109 = vmatpush2.msra.mxu0 0.0
    %110 = vmatprep.subr.mxu0 0.0
    %111 = vmatpush2.msra.mxu0 0.0
    %112 = vmatprep.subr.mxu0 0.0
    %113 = vmatpush2.msra.mxu0 0.0
    %114 = vmatprep.subr.mxu0 0.0
    %115 = vmatpush2.msra.mxu0 0.0
    %116 = vmatprep.subr.mxu0 0.0
    %117 = vmatpush2.msra.mxu0 0.0
    %118 = vmatprep.subr.mxu0 0.0
    %119 = vmatpush2.msra.mxu0 0.0
    %120 = vmatprep.subr.mxu0 0.0
    %121 = vmatpush2.msra.mxu0 0.0
    %122 = vmatprep.subr.mxu0 0.0
    %123 = vmatpush2.msra.mxu0 0.0
    %124 = vmatprep.subr.mxu0 0.0
    %125 = vmatpush2.msra.mxu0 0.0
    %126 = vmatprep.subr.mxu0 0.0
    %127 = vmatpush2.msra.mxu0 0.0
    %128 = vmatprep.mubr.f32.mxu0 0.0
    %129 = vmatmul.mubr.f32.gmra.mxu0 %v59
    %v130 = vpop.f32.mrf.mxu0
    %v131 = vadd.f32 0.0, %v130
    %v132 = vpop.f32.mrf.mxu0
    %133 = vmatprep.mubr.f32.mxu0 0.0
    %134 = vmatmul.mubr.f32.gmra.mxu0 %v62
    %v135 = vpop.f32.mrf.mxu0
    %v136 = vadd.f32 0.0, %v135
    %v137 = vpop.f32.mrf.mxu0
    %138 = vdwg.mxu0
    %v139 = vadd.f32 %v49, %v131
    %v140 = vadd.f32 %v50, %v136
    %141 = vst [vmem:[#allocation2] sm:$0xff] %v139
    %142 = vst [vmem:[#allocation2 + $0x8] sm:$0xff] %v140
    // Predicated region
    $region26: #{tpu_custom_call.1} parent=1 // pred_check
      %p143 = pneg %p43
    $region27: #{tpu_custom_call.1} parent=1 // pred_check_branch
      %145 = sbr.rel (%p143) target = $region29
    $region28: #{tpu_custom_call.1} parent=1 // pred_region
      %v146 = vld [vmem:[#allocation2] sm:$0xff]
      %v147 = vld [vmem:[#allocation2 + $0x8] sm:$0xff]
      %v148 = vld [vmem:[%s2] sm:$0x1]
      %v150 = vlaneseq
      %v151 = vshrl.u32 %v150, 7
      %v152 = vsub.s32 0, %v151
      %v153 = vrot.slane %v148, %v152
      %v155 = vadd.f32 %v146, %v153
      %v156 = vadd.f32 %v147, %v153
      %v157 = vmul.f32 %v155, 0.5
      %v158 = vmul.f32 %v156, 0.5
      %v159 = vmul.f32 %v155, %v155
      %v160 = vmul.f32 %v156, %v156
      %v161 = vmul.f32 %v159, %v155
      %v162 = vmul.f32 %v160, %v156
      %v163 = vmul.f32 %v161, 0.044715
      %v164 = vmul.f32 %v162, 0.044715
      %v165 = vadd.f32 %v155, %v163
      %v166 = vadd.f32 %v156, %v164
      %v167 = vmul.f32 %v165, 0.7978846
      %v168 = vmul.f32 %v166, 0.7978846
      %v169 = vtanh.pop %v167
      %v170 = vtanh.pop %v168
      %v171 = vadd.f32 %v169, 1.0
      %v172 = vadd.f32 %v170, 1.0
      %v173 = vmul.f32 %v157, %v171
      %v174 = vmul.f32 %v158, %v172
      %175 = vst [vmem:[#allocation8] sm:$0xff] %v173
      %176 = vst [vmem:[#allocation8 + $0x8] sm:$0xff] %v174
    $region29: #{tpu_custom_call.1} parent=1 // pred_fallthru
      _
    // Predicated region
    $region30: #{tpu_custom_call.1} parent=1 // pred_check
      _
    $region31: #{tpu_custom_call.1} parent=1 // pred_check_branch
      %178 = sbr.rel (0) target = $region33
    $region32: #{tpu_custom_call.1} parent=1 // pred_region
      %s180 = ssub.s32 256, 256
      %181 = vsyncadd [#allocation5], %s180
      %s182 = sshll.u32 [#allocation8], 4
      %s183 = int_to_ptr.vmem [resolvable:$true] %s182
      %188 = dma.vmem_to_hbm [thread:$0]  %s183, 256, %s3, [#allocation5], 128, 128, 8
    $region33: #{tpu_custom_call.1} parent=1 // pred_fallthru
      _
    // Predicated region
    $region34: #{tpu_custom_call.1} parent=1 // pred_check
      _
    $region35: #{tpu_custom_call.1} parent=1 // pred_check_branch
      %190 = sbr.rel (0) target = $region37
    $region36: #{tpu_custom_call.1} parent=1 // pred_region
      %191 = dma.done [#allocation5], 256
    $region37: #{tpu_custom_call.1} parent=1 // pred_fallthru
      _
    %192 = vsyncpa [#allocation4], 1
    %193 = vsyncpa [#allocation7], 1
    %194 = vsyncpa [#allocation5], 1

</llo_original>
